<compile_context>
chip_gen: v7x
topology: tpu7x:2x2x1
jax: 0.10.0
libtpu: 0.0.40
codegen_flags: <defaults>
</compile_context>

<pallas_src>
import jax
import jax.numpy as jnp
from jax.experimental import pallas as pl
from jax.experimental.pallas import tpu as pltpu


def _discriminator_kernel(xt_ref, w1t_ref, b1_ref, w2t_ref, b2_ref,
                          w3_ref, b3_ref, out_ref):
    # xt_ref : (in, TB)   -- batch on lanes
    # w1t_ref: (hid, in)   b1_ref: (hid, 1)
    # w2t_ref: (hid, hid)  b2_ref: (hid, 1)
    # w3_ref : (hid, 1)    b3_ref: (1, 1)
    # out_ref: (1, TB)     -- lane-dense
    xt = xt_ref[...]

    h1 = jnp.dot(w1t_ref[...], xt, preferred_element_type=jnp.float32) + b1_ref[...]
    h1 = jnp.maximum(h1, 0.0)                                   # (hid, TB)

    h2 = jnp.dot(w2t_ref[...], h1, preferred_element_type=jnp.float32) + b2_ref[...]
    h2 = jnp.maximum(h2, 0.0)                                   # (hid, TB)

    # Final N=1 layer off the MXU: VPU multiply + cross-sublane reduce -> (1, TB)
    z = jnp.sum(h2 * w3_ref[...], axis=0, keepdims=True) + b3_ref[...]

    # Sigmoid via EUP exp + EUP reciprocal (keeps the divide off the VALU).
    out_ref[...] = pl.reciprocal(1.0 + jnp.exp(-z), approx=True)


def discriminator_forward(x, params, *, batch_tile=512):
    """x: (batch, input_size) float32 -> (batch, 1) float32 in [0, 1]."""
    w1, b1, w2, b2, w3, b3 = params
    x = x.astype(jnp.float32)
    batch, in_size = x.shape
    hid = w1.shape[1]

    # Tile choice: one full-array tile for small batches; otherwise 128-aligned
    # lane-dense tiles with the batch padded up to a tile multiple.
    if batch <= batch_tile:
        tb, b_pad = batch, batch
    else:
        assert batch_tile % 128 == 0
        tb = batch_tile
        b_pad = pl.cdiv(batch, tb) * tb
    num_tiles = b_pad // tb

    # Batch on the lane axis; zero-pad extra rows (their scores get sliced off).
    xt = x.T
    if b_pad != batch:
        xt = jnp.pad(xt, ((0, 0), (0, b_pad - batch)))

    f32 = jnp.float32
    args = (
        xt,
        w1.T.astype(f32), b1.reshape(hid, 1).astype(f32),
        w2.T.astype(f32), b2.reshape(hid, 1).astype(f32),
        w3.reshape(hid, 1).astype(f32), b3.reshape(1, 1).astype(f32),
    )

    flops = 2 * b_pad * (in_size * hid + hid * hid + hid)
    bytes_accessed = 4 * (b_pad * in_size + b_pad
                          + in_size * hid + hid * hid + hid + 2 * hid + 1)

    const = lambda i: (0, 0)  # weights/biases stay VMEM-resident across steps
    out = pl.pallas_call(
        _discriminator_kernel,
        out_shape=jax.ShapeDtypeStruct((1, b_pad), f32),
        grid=(num_tiles,),
        in_specs=[
            pl.BlockSpec((in_size, tb), lambda i: (0, i)),  # x^T batch tile
            pl.BlockSpec((hid, in_size), const),
            pl.BlockSpec((hid, 1), const),
            pl.BlockSpec((hid, hid), const),
            pl.BlockSpec((hid, 1), const),
            pl.BlockSpec((hid, 1), const),
            pl.BlockSpec((1, 1), const),
        ],
        out_specs=pl.BlockSpec((1, tb), lambda i: (0, i)),  # lane-dense output
        compiler_params=pltpu.CompilerParams(
            dimension_semantics=("parallel",)),
        cost_estimate=pl.CostEstimate(
            flops=flops, transcendentals=2 * b_pad,
            bytes_accessed=bytes_accessed),
    )(*args)

    return out.reshape(b_pad, 1)[:batch]


# Pure-JAX reference for the correctness check.
def _reference_forward(x, params):
    w1, b1, w2, b2, w3, b3 = params
    h1 = jnp.maximum(x @ w1 + b1, 0.0)
    h2 = jnp.maximum(h1 @ w2 + b2, 0.0)
    return 1.0 / (1.0 + jnp.exp(-(h2 @ w3 + b3)))


if __name__ == "__main__":
    key = jax.random.PRNGKey(0)
    ks = jax.random.split(key, 8)

    input_size, hid_size = 8, 32

    # nn.Linear default init: U(-1/sqrt(fan_in), 1/sqrt(fan_in)) for W and b.
    def linear_init(kw, kb, fan_in, fan_out):
        bound = 1.0 / (fan_in ** 0.5)
        w = jax.random.uniform(kw, (fan_in, fan_out), minval=-bound, maxval=bound,
                               dtype=jnp.float32)
        b = jax.random.uniform(kb, (fan_out,), minval=-bound, maxval=bound,
                               dtype=jnp.float32)
        return w, b

    w1, b1 = linear_init(ks[1], ks[2], input_size, hid_size)
    w2, b2 = linear_init(ks[3], ks[4], hid_size, hid_size)
    w3, b3 = linear_init(ks[5], ks[6], hid_size, 1)
    params = (w1, b1, w2, b2, w3, b3)

    fwd = jax.jit(discriminator_forward)

    # Small batch (single full-array tile): matches the PyTorch toy case.
    # matches: x_rand = 2 * torch.rand((batch, input_size)) - 1
    batch = 8
    x = 2.0 * jax.random.uniform(ks[0], (batch, input_size), dtype=jnp.float32) - 1.0
    out = jax.block_until_ready(fwd(x, params))
    assert out.shape == (batch, 1), out.shape
    assert bool(jnp.all(jnp.isfinite(out)))
    assert bool(jnp.all((out >= 0.0) & (out <= 1.0)))
    ref = _reference_forward(x, params)
    assert bool(jnp.allclose(out, ref, atol=2e-3, rtol=2e-3)), \
        float(jnp.max(jnp.abs(out - ref)))

    # Larger batch: exercises the 512-row lane-dense tiles, batch padding and
    # the parallel batch grid (uses both TensorCores on v7x).
    batch2 = 600
    x2 = 2.0 * jax.random.uniform(ks[7], (batch2, input_size), dtype=jnp.float32) - 1.0
    out2 = jax.block_until_ready(fwd(x2, params))
    assert out2.shape == (batch2, 1), out2.shape
    ref2 = _reference_forward(x2, params)
    assert bool(jnp.allclose(out2, ref2, atol=2e-3, rtol=2e-3)), \
        float(jnp.max(jnp.abs(out2 - ref2)))

    print("KERNEL_OK")
</pallas_src>

<mosaic_0001>
module attributes {stable_mosaic.version = 11 : i64} {
  func.func @_discriminator_kernel(%arg0: i32, %arg1: memref<8x8xf32, #tpu.memory_space<vmem>>, %arg2: memref<32x8xf32, #tpu.memory_space<vmem>>, %arg3: memref<32x1xf32, #tpu.memory_space<vmem>>, %arg4: memref<32x32xf32, #tpu.memory_space<vmem>>, %arg5: memref<32x1xf32, #tpu.memory_space<vmem>>, %arg6: memref<32x1xf32, #tpu.memory_space<vmem>>, %arg7: memref<1x1xf32, #tpu.memory_space<vmem>>, %arg8: memref<1x8xf32, #tpu.memory_space<vmem>>) attributes {dimension_semantics = [#tpu.dimension_semantics<parallel>], iteration_bounds = array<i64: 1>, scalar_prefetch = 0 : i64, scratch_operands = 0 : i64, tpu.core_type = #tpu.core_type<tc>, window_params = [{transform_indices = @transform_0, window_bounds = array<i64: 8, 8>}, {pipeline_mode = #tpu.pipeline_mode<synchronous>, transform_indices = @transform_1, window_bounds = array<i64: 32, 8>}, {pipeline_mode = #tpu.pipeline_mode<synchronous>, transform_indices = @transform_2, window_bounds = array<i64: 32, 1>}, {pipeline_mode = #tpu.pipeline_mode<synchronous>, transform_indices = @transform_3, window_bounds = array<i64: 32, 32>}, {pipeline_mode = #tpu.pipeline_mode<synchronous>, transform_indices = @transform_4, window_bounds = array<i64: 32, 1>}, {pipeline_mode = #tpu.pipeline_mode<synchronous>, transform_indices = @transform_5, window_bounds = array<i64: 32, 1>}, {pipeline_mode = #tpu.pipeline_mode<synchronous>, transform_indices = @transform_6, window_bounds = array<i64: 1, 1>}, {transform_indices = @transform_7, window_bounds = array<i64: 1, 8>}]} {
    %c0 = arith.constant 0 : index
    %c0_0 = arith.constant 0 : index
    %0 = vector.load %arg1[%c0, %c0_0] : memref<8x8xf32, #tpu.memory_space<vmem>>, vector<8x8xf32>
    %c0_1 = arith.constant 0 : index
    %c0_2 = arith.constant 0 : index
    %1 = vector.load %arg2[%c0_1, %c0_2] : memref<32x8xf32, #tpu.memory_space<vmem>>, vector<32x8xf32>
    %cst = arith.constant dense<0.000000e+00> : vector<32x8xf32>
    %2 = tpu.matmul %1, %0, %cst {dimension_numbers = #tpu.dot_dimension_numbers<[1], [0], [0], [1], [0, 0, 1, 1], [], []>} : vector<32x8xf32>, vector<8x8xf32>, vector<32x8xf32> -> vector<32x8xf32>
    %c0_3 = arith.constant 0 : index
    %c0_4 = arith.constant 0 : index
    %3 = vector.load %arg3[%c0_3, %c0_4] : memref<32x1xf32, #tpu.memory_space<vmem>>, vector<32x1xf32>
    %4 = vector.broadcast %3 : vector<32x1xf32> to vector<32x8xf32>
    %5 = arith.addf %2, %4 : vector<32x8xf32>
    %cst_5 = arith.constant 0.000000e+00 : f32
    %6 = vector.broadcast %cst_5 : f32 to vector<32x8xf32>
    %7 = arith.maximumf %5, %6 : vector<32x8xf32>
    %c0_6 = arith.constant 0 : index
    %c0_7 = arith.constant 0 : index
    %8 = vector.load %arg4[%c0_6, %c0_7] : memref<32x32xf32, #tpu.memory_space<vmem>>, vector<32x32xf32>
    %cst_8 = arith.constant dense<0.000000e+00> : vector<32x8xf32>
    %9 = tpu.matmul %8, %7, %cst_8 {dimension_numbers = #tpu.dot_dimension_numbers<[1], [0], [0], [1], [0, 0, 1, 1], [], []>} : vector<32x32xf32>, vector<32x8xf32>, vector<32x8xf32> -> vector<32x8xf32>
    %c0_9 = arith.constant 0 : index
    %c0_10 = arith.constant 0 : index
    %10 = vector.load %arg5[%c0_9, %c0_10] : memref<32x1xf32, #tpu.memory_space<vmem>>, vector<32x1xf32>
    %11 = vector.broadcast %10 : vector<32x1xf32> to vector<32x8xf32>
    %12 = arith.addf %9, %11 : vector<32x8xf32>
    %cst_11 = arith.constant 0.000000e+00 : f32
    %13 = vector.broadcast %cst_11 : f32 to vector<32x8xf32>
    %14 = arith.maximumf %12, %13 : vector<32x8xf32>
    %c0_12 = arith.constant 0 : index
    %c0_13 = arith.constant 0 : index
    %15 = vector.load %arg6[%c0_12, %c0_13] : memref<32x1xf32, #tpu.memory_space<vmem>>, vector<32x1xf32>
    %16 = vector.broadcast %15 : vector<32x1xf32> to vector<32x8xf32>
    %17 = arith.mulf %14, %16 : vector<32x8xf32>
    %cst_14 = arith.constant dense<0.000000e+00> : vector<8xf32>
    %18 = vector.multi_reduction <add>, %17, %cst_14 [0] : vector<32x8xf32> to vector<8xf32>
    %19 = vector.shape_cast %18 : vector<8xf32> to vector<1x8xf32>
    %c0_15 = arith.constant 0 : index
    %c0_16 = arith.constant 0 : index
    %20 = vector.load %arg7[%c0_15, %c0_16] : memref<1x1xf32, #tpu.memory_space<vmem>>, vector<1x1xf32>
    %21 = vector.broadcast %20 : vector<1x1xf32> to vector<1x8xf32>
    %22 = arith.addf %19, %21 : vector<1x8xf32>
    %cst_17 = arith.constant 0.000000e+00 : f32
    %23 = vector.broadcast %cst_17 : f32 to vector<1x8xf32>
    %24 = arith.subf %23, %22 : vector<1x8xf32>
    %25 = math.exp %24 : vector<1x8xf32>
    %cst_18 = arith.constant 1.000000e+00 : f32
    %26 = vector.broadcast %cst_18 : f32 to vector<1x8xf32>
    %27 = arith.addf %26, %25 : vector<1x8xf32>
    %28 = tpu.reciprocal %27 {approx = true} : vector<1x8xf32> -> vector<1x8xf32>
    %c0_19 = arith.constant 0 : index
    %c0_20 = arith.constant 0 : index
    %29 = vector.load %arg8[%c0_19, %c0_20] : memref<1x8xf32, #tpu.memory_space<vmem>>, vector<1x8xf32>
    tpu.vector_store %arg8[%c0_19, %c0_20], %28 {strides = array<i32>} : memref<1x8xf32, #tpu.memory_space<vmem>>, vector<1x8xf32>,
    return
  }
  func.func @transform_0(%arg0: i32) -> (i32, i32) {
    %c0_i32 = arith.constant 0 : i32
    %c0_i32_0 = arith.constant 0 : i32
    return %c0_i32, %arg0 : i32, i32
  }
  func.func @transform_1(%arg0: i32) -> (i32, i32) {
    %c0_i32 = arith.constant 0 : i32
    %c0_i32_0 = arith.constant 0 : i32
    %c0_i32_1 = arith.constant 0 : i32
    return %c0_i32, %c0_i32_0 : i32, i32
  }
  func.func @transform_2(%arg0: i32) -> (i32, i32) {
    %c0_i32 = arith.constant 0 : i32
    %c0_i32_0 = arith.constant 0 : i32
    %c0_i32_1 = arith.constant 0 : i32
    return %c0_i32, %c0_i32_0 : i32, i32
  }
  func.func @transform_3(%arg0: i32) -> (i32, i32) {
    %c0_i32 = arith.constant 0 : i32
    %c0_i32_0 = arith.constant 0 : i32
    %c0_i32_1 = arith.constant 0 : i32
    return %c0_i32, %c0_i32_0 : i32, i32
  }
  func.func @transform_4(%arg0: i32) -> (i32, i32) {
    %c0_i32 = arith.constant 0 : i32
    %c0_i32_0 = arith.constant 0 : i32
    %c0_i32_1 = arith.constant 0 : i32
    return %c0_i32, %c0_i32_0 : i32, i32
  }
  func.func @transform_5(%arg0: i32) -> (i32, i32) {
    %c0_i32 = arith.constant 0 : i32
    %c0_i32_0 = arith.constant 0 : i32
    %c0_i32_1 = arith.constant 0 : i32
    return %c0_i32, %c0_i32_0 : i32, i32
  }
  func.func @transform_6(%arg0: i32) -> (i32, i32) {
    %c0_i32 = arith.constant 0 : i32
    %c0_i32_0 = arith.constant 0 : i32
    %c0_i32_1 = arith.constant 0 : i32
    return %c0_i32, %c0_i32_0 : i32, i32
  }
  func.func @transform_7(%arg0: i32) -> (i32, i32) {
    %c0_i32 = arith.constant 0 : i32
    %c0_i32_0 = arith.constant 0 : i32
    return %c0_i32, %arg0 : i32, i32
  }
}

</mosaic_0001>

<llo_original>
// kernel: discriminator_forward.1
$region0: #{discriminator_forward.1}
  #allocation0 [shape = 'u32[]', space=smem, size = 0x4, offset = 0x4, fixed_abs, tag = 'smem constant byte address 0x4 - core index']
  #allocation1 [shape = 'u32[144,128]{1,0:T(1,128)}', space=vmem, size = 0x12000, scoped, tag = 'internal scratch']
  #allocation2 [shape = 'f32[1,1]{1,0:T(1,128)S(1)}', space=vmem, size = 0x200, scoped, tag = 'scoped memory for discriminator_forward.1']
  %s0 = inlined_call_operand.vmem [shape: f32[8,8], index: 0, kind: input, shape index: {}]
  %s1 = inlined_call_operand.vmem [shape: f32[32,8], index: 1, kind: input, shape index: {}]
  %s2 = inlined_call_operand.vmem [shape: f32[32,1], index: 2, kind: input, shape index: {}]
  %s3 = inlined_call_operand.vmem [shape: f32[32,32], index: 3, kind: input, shape index: {}]
  %s4 = inlined_call_operand.vmem [shape: f32[32,1], index: 4, kind: input, shape index: {}]
  %s5 = inlined_call_operand.vmem [shape: f32[32,1], index: 5, kind: input, shape index: {}]
  %s6 = inlined_call_operand.<no memory space> [shape: f32[1,1], index: 6, kind: input, shape index: {}]
  %s7 = inlined_call_operand.hbm [shape: f32[1,8], index: 7, kind: output, shape index: {}]
  %s8 = sld [smem:[#allocation0]]
  $region38: #{discriminator_forward.1} parent=0
    _
  %s10 = ssub.s32 1, %s8
  %s11 = scalar_select 0, %s10, %s8
  %v12 = vstv %s6
  %13 = vst [vmem:[#allocation2] sm:$0x1] %v12
  $region1: #{discriminator_forward.1} parent=0
    #allocation3 [shape = 'u8[512]{0}', space=vmem, size = 0x400, scoped, tag = 'output window, operand 0, single buffered']
    #allocation4 [shape = 's32[1]{0}', space=sflag, size = 0x4, scoped, tag = 'scoped memory for discriminator_forward.1']
    %14 = vsyncpa [#allocation4], 0
    // Predicated region
    $region2: #{discriminator_forward.1} parent=1 // pred_check
      _
    $region3: #{discriminator_forward.1} parent=1 // pred_check_branch
      %16 = sbr.rel (0) target = $region5
    $region4: #{discriminator_forward.1} parent=1 // pred_region
      _
    $region5: #{discriminator_forward.1} parent=1 // pred_fallthru
      _
    // Predicated region
    $region6: #{discriminator_forward.1} parent=1 // pred_check
      _
    $region7: #{discriminator_forward.1} parent=1 // pred_check_branch
      %18 = sbr.rel (0) target = $region9
    $region8: #{discriminator_forward.1} parent=1 // pred_region
      _
    $region9: #{discriminator_forward.1} parent=1 // pred_fallthru
      _
    // Predicated region
    $region10: #{discriminator_forward.1} parent=1 // pred_check
      _
    $region11: #{discriminator_forward.1} parent=1 // pred_check_branch
      %20 = sbr.rel (0) target = $region13
    $region12: #{discriminator_forward.1} parent=1 // pred_region
      _
    $region13: #{discriminator_forward.1} parent=1 // pred_fallthru
      _
    // Predicated region
    $region14: #{discriminator_forward.1} parent=1 // pred_check
      _
    $region15: #{discriminator_forward.1} parent=1 // pred_check_branch
      %22 = sbr.rel (0) target = $region17
    $region16: #{discriminator_forward.1} parent=1 // pred_region
      _
    $region17: #{discriminator_forward.1} parent=1 // pred_fallthru
      _
    // Predicated region
    $region18: #{discriminator_forward.1} parent=1 // pred_check
      _
    $region19: #{discriminator_forward.1} parent=1 // pred_check_branch
      %24 = sbr.rel (0) target = $region21
    $region20: #{discriminator_forward.1} parent=1 // pred_region
      _
    $region21: #{discriminator_forward.1} parent=1 // pred_fallthru
      _
    // Predicated region
    $region22: #{discriminator_forward.1} parent=1 // pred_check
      _
    $region23: #{discriminator_forward.1} parent=1 // pred_check_branch
      %26 = sbr.rel (0) target = $region25
    $region24: #{discriminator_forward.1} parent=1 // pred_region
      _
    $region25: #{discriminator_forward.1} parent=1 // pred_fallthru
      _
    // Predicated region
    $region26: #{discriminator_forward.1} parent=1 // pred_check
      _
    $region27: #{discriminator_forward.1} parent=1 // pred_check_branch
      %28 = sbr.rel (0) target = $region29
    $region28: #{discriminator_forward.1} parent=1 // pred_region
      _
    $region29: #{discriminator_forward.1} parent=1 // pred_fallthru
      _
    %v29 = vld [vmem:[%s0] sm:$0xff]
    %v30 = vld [vmem:[%s1] sm:$0xff]
    %v31 = vld [vmem:[%s1 + $0x8] sm:$0xff]
    %v32 = vld [vmem:[%s1 + $0x10] sm:$0xff]
    %v33 = vld [vmem:[%s1 + $0x18] sm:$0xff]
    %v34 = vld [vmem:[%s2] sm:$0xff]
    %v35 = vld [vmem:[%s2 + $0x8] sm:$0xff]
    %v36 = vld [vmem:[%s2 + $0x10] sm:$0xff]
    %v37 = vld [vmem:[%s2 + $0x18] sm:$0xff]
    %39 = vset.pattern.permute.xlu0 0
    %40 = vperm.xlu0 %39, %v34
    %v41 = vpop.permute.xlu0 %40
    %44 = vset.pattern.permute.xlu0 0
    %45 = vperm.xlu0 %44, %v35
    %v46 = vpop.permute.xlu0 %45
    %49 = vset.pattern.permute.xlu0 0
    %50 = vperm.xlu0 %49, %v36
    %v51 = vpop.permute.xlu0 %50
    %54 = vset.pattern.permute.xlu0 0
    %55 = vperm.xlu0 %54, %v37
    %v56 = vpop.permute.xlu0 %55
    %vm58 = vcmask 64512
    %v60 = vsel %vm58, %v30, 0
    %v63 = vsel %vm58, %v31, 0
    %v66 = vsel %vm58, %v32, 0
    %v69 = vsel %vm58, %v33, 0
    %71 = vmatprep.subr.mxu0 0.0
    %72 = vmatpush1.msra.mxu0 %v29
    %73 = vmatprep.subr.mxu0 0.0
    %74 = vmatpush1.msra.mxu0 0.0
    %75 = vmatprep.subr.mxu0 0.0
    %76 = vmatpush1.msra.mxu0 0.0
    %77 = vmatprep.subr.mxu0 0.0
    %78 = vmatpush1.msra.mxu0 0.0
    %79 = vmatprep.subr.mxu0 0.0
    %80 = vmatpush1.msra.mxu0 0.0
    %81 = vmatprep.subr.mxu0 0.0
    %82 = vmatpush1.msra.mxu0 0.0
    %83 = vmatprep.subr.mxu0 0.0
    %84 = vmatpush1.msra.mxu0 0.0
    %85 = vmatprep.subr.mxu0 0.0
    %86 = vmatpush1.msra.mxu0 0.0
    %87 = vmatprep.subr.mxu0 0.0
    %88 = vmatpush1.msra.mxu0 0.0
    %89 = vmatprep.subr.mxu0 0.0
    %90 = vmatpush1.msra.mxu0 0.0
    %91 = vmatprep.subr.mxu0 0.0
    %92 = vmatpush1.msra.mxu0 0.0
    %93 = vmatprep.subr.mxu0 0.0
    %94 = vmatpush1.msra.mxu0 0.0
    %95 = vmatprep.subr.mxu0 0.0
    %96 = vmatpush1.msra.mxu0 0.0
    %97 = vmatprep.subr.mxu0 0.0
    %98 = vmatpush1.msra.mxu0 0.0
    %99 = vmatprep.subr.mxu0 0.0
    %100 = vmatpush1.msra.mxu0 0.0
    %101 = vmatprep.subr.mxu0 0.0
    %102 = vmatpush1.msra.mxu0 0.0
    %103 = vmatprep.subr.mxu0 0.0
    %104 = vmatpush1.msra.mxu0 0.0
    %105 = vmatprep.subr.mxu0 0.0
    %106 = vmatpush1.msra.mxu0 0.0
    %107 = vmatprep.subr.mxu0 0.0
    %108 = vmatpush1.msra.mxu0 0.0
    %109 = vmatprep.subr.mxu0 0.0
    %110 = vmatpush1.msra.mxu0 0.0
    %111 = vmatprep.subr.mxu0 0.0
    %112 = vmatpush1.msra.mxu0 0.0
    %113 = vmatprep.subr.mxu0 0.0
    %114 = vmatpush1.msra.mxu0 0.0
    %115 = vmatprep.subr.mxu0 0.0
    %116 = vmatpush1.msra.mxu0 0.0
    %117 = vmatprep.subr.mxu0 0.0
    %118 = vmatpush1.msra.mxu0 0.0
    %119 = vmatprep.subr.mxu0 0.0
    %120 = vmatpush1.msra.mxu0 0.0
    %121 = vmatprep.subr.mxu0 0.0
    %122 = vmatpush1.msra.mxu0 0.0
    %123 = vmatprep.subr.mxu0 0.0
    %124 = vmatpush1.msra.mxu0 0.0
    %125 = vmatprep.subr.mxu0 0.0
    %126 = vmatpush1.msra.mxu0 0.0
    %127 = vmatprep.subr.mxu0 0.0
    %128 = vmatpush1.msra.mxu0 0.0
    %129 = vmatprep.subr.mxu0 0.0
    %130 = vmatpush1.msra.mxu0 0.0
    %131 = vmatprep.subr.mxu0 0.0
    %132 = vmatpush1.msra.mxu0 0.0
    %133 = vmatprep.subr.mxu0 0.0
    %134 = vmatpush1.msra.mxu0 0.0
    %135 = vmatprep.mubr.f32.mxu0 0.0
    %136 = vmatmul.mubr.f32.gmra.mrb[0].mxu0 %v60
    %v137 = vpop.f32.mrb[0].mxu0
    %v138 = vadd.f32 %v41, %v137
    %v139 = vpop.f32.mrb[0].mxu0
    %140 = vmatprep.mubr.f32.mxu0 0.0
    %141 = vmatmul.mubr.f32.gmra.mrb[0].mxu0 %v63
    %v142 = vpop.f32.mrb[0].mxu0
    %v143 = vadd.f32 %v46, %v142
    %v144 = vpop.f32.mrb[0].mxu0
    %145 = vmatprep.mubr.f32.mxu0 0.0
    %146 = vmatmul.mubr.f32.gmra.mrb[0].mxu0 %v66
    %v147 = vpop.f32.mrb[0].mxu0
    %v148 = vadd.f32 %v51, %v147
    %v149 = vpop.f32.mrb[0].mxu0
    %150 = vmatprep.mubr.f32.mxu0 0.0
    %151 = vmatmul.mubr.f32.gmra.mrb[0].mxu0 %v69
    %v152 = vpop.f32.mrb[0].mxu0
    %v153 = vadd.f32 %v56, %v152
    %v154 = vpop.f32.mrb[0].mxu0
    %155 = vdwg.mxu0
    %v156 = vmax.f32 %v138, 0.0
    %v157 = vmax.f32 %v143, 0.0
    %v158 = vmax.f32 %v148, 0.0
    %v159 = vmax.f32 %v153, 0.0
    %v160 = vld [vmem:[%s3] sm:$0xff]
    %v161 = vld [vmem:[%s3 + $0x8] sm:$0xff]
    %v162 = vld [vmem:[%s3 + $0x10] sm:$0xff]
    %v163 = vld [vmem:[%s3 + $0x18] sm:$0xff]
    %v164 = vld [vmem:[%s4] sm:$0xff]
    %v165 = vld [vmem:[%s4 + $0x8] sm:$0xff]
    %v166 = vld [vmem:[%s4 + $0x10] sm:$0xff]
    %v167 = vld [vmem:[%s4 + $0x18] sm:$0xff]
    %169 = vset.pattern.permute.xlu0 0
    %170 = vperm.xlu0 %169, %v164
    %v171 = vpop.permute.xlu0 %170
    %174 = vset.pattern.permute.xlu0 0
    %175 = vperm.xlu0 %174, %v165
    %v176 = vpop.permute.xlu0 %175
    %179 = vset.pattern.permute.xlu0 0
    %180 = vperm.xlu0 %179, %v166
    %v181 = vpop.permute.xlu0 %180
    %184 = vset.pattern.permute.xlu0 0
    %185 = vperm.xlu0 %184, %v167
    %v186 = vpop.permute.xlu0 %185
    %vm188 = vcmask 261120
    %v190 = vsel %vm188, %v160, 0
    %v193 = vsel %vm188, %v161, 0
    %v196 = vsel %vm188, %v162, 0
    %v199 = vsel %vm188, %v163, 0
    %201 = vmatprep.subr.mxu0 0.0
    %202 = vmatpush1.msra.mxu0 %v156
    %203 = vmatprep.subr.mxu0 0.0
    %204 = vmatpush1.msra.mxu0 %v157
    %205 = vmatprep.subr.mxu0 0.0
    %206 = vmatpush1.msra.mxu0 %v158
    %207 = vmatprep.subr.mxu0 0.0
    %208 = vmatpush1.msra.mxu0 %v159
    %209 = vmatprep.subr.mxu0 0.0
    %210 = vmatpush1.msra.mxu0 0.0
    %211 = vmatprep.subr.mxu0 0.0
    %212 = vmatpush1.msra.mxu0 0.0
    %213 = vmatprep.subr.mxu0 0.0
    %214 = vmatpush1.msra.mxu0 0.0
    %215 = vmatprep.subr.mxu0 0.0
    %216 = vmatpush1.msra.mxu0 0.0
    %217 = vmatprep.subr.mxu0 0.0
    %218 = vmatpush1.msra.mxu0 0.0
    %219 = vmatprep.subr.mxu0 0.0
    %220 = vmatpush1.msra.mxu0 0.0
    %221 = vmatprep.subr.mxu0 0.0
    %222 = vmatpush1.msra.mxu0 0.0
    %223 = vmatprep.subr.mxu0 0.0
    %224 = vmatpush1.msra.mxu0 0.0
    %225 = vmatprep.subr.mxu0 0.0
    %226 = vmatpush1.msra.mxu0 0.0
    %227 = vmatprep.subr.mxu0 0.0
    %228 = vmatpush1.msra.mxu0 0.0
    %229 = vmatprep.subr.mxu0 0.0
    %230 = vmatpush1.msra.mxu0 0.0
    %231 = vmatprep.subr.mxu0 0.0
    %232 = vmatpush1.msra.mxu0 0.0
    %233 = vmatprep.subr.mxu0 0.0
    %234 = vmatpush1.msra.mxu0 0.0
    %235 = vmatprep.subr.mxu0 0.0
    %236 = vmatpush1.msra.mxu0 0.0
    %237 = vmatprep.subr.mxu0 0.0
    %238 = vmatpush1.msra.mxu0 0.0
    %239 = vmatprep.subr.mxu0 0.0
    %240 = vmatpush1.msra.mxu0 0.0
    %241 = vmatprep.subr.mxu0 0.0
    %242 = vmatpush1.msra.mxu0 0.0
    %243 = vmatprep.subr.mxu0 0.0
    %244 = vmatpush1.msra.mxu0 0.0
    %245 = vmatprep.subr.mxu0 0.0
    %246 = vmatpush1.msra.mxu0 0.0
    %247 = vmatprep.subr.mxu0 0.0
    %248 = vmatpush1.msra.mxu0 0.0
    %249 = vmatprep.subr.mxu0 0.0
    %250 = vmatpush1.msra.mxu0 0.0
    %251 = vmatprep.subr.mxu0 0.0
    %252 = vmatpush1.msra.mxu0 0.0
    %253 = vmatprep.subr.mxu0 0.0
    %254 = vmatpush1.msra.mxu0 0.0
    %255 = vmatprep.subr.mxu0 0.0
    %256 = vmatpush1.msra.mxu0 0.0
    %257 = vmatprep.subr.mxu0 0.0
    %258 = vmatpush1.msra.mxu0 0.0
    %259 = vmatprep.subr.mxu0 0.0
    %260 = vmatpush1.msra.mxu0 0.0
    %261 = vmatprep.subr.mxu0 0.0
    %262 = vmatpush1.msra.mxu0 0.0
    %263 = vmatprep.subr.mxu0 0.0
    %264 = vmatpush1.msra.mxu0 0.0
    %265 = vmatprep.mubr.f32.mxu0 0.0
    %266 = vmatmul.mubr.f32.gmra.mrb[0].mxu0 %v190
    %v267 = vpop.f32.mrb[0].mxu0
    %v268 = vadd.f32 %v171, %v267
    %v269 = vpop.f32.mrb[0].mxu0
    %270 = vmatprep.mubr.f32.mxu0 0.0
    %271 = vmatmul.mubr.f32.gmra.mrb[0].mxu0 %v193
    %v272 = vpop.f32.mrb[0].mxu0
    %v273 = vadd.f32 %v176, %v272
    %v274 = vpop.f32.mrb[0].mxu0
    %275 = vmatprep.mubr.f32.mxu0 0.0
    %276 = vmatmul.mubr.f32.gmra.mrb[0].mxu0 %v196
    %v277 = vpop.f32.mrb[0].mxu0
    %v278 = vadd.f32 %v181, %v277
    %v279 = vpop.f32.mrb[0].mxu0
    %280 = vmatprep.mubr.f32.mxu0 0.0
    %281 = vmatmul.mubr.f32.gmra.mrb[0].mxu0 %v199
    %v282 = vpop.f32.mrb[0].mxu0
    %v283 = vadd.f32 %v186, %v282
    %v284 = vpop.f32.mrb[0].mxu0
    %285 = vdwg.mxu0
    %v286 = vmax.f32 %v268, 0.0
    %v287 = vmax.f32 %v273, 0.0
    %v288 = vmax.f32 %v278, 0.0
    %v289 = vmax.f32 %v283, 0.0
    %v290 = vld [vmem:[%s5] sm:$0xff]
    %v291 = vld [vmem:[%s5 + $0x8] sm:$0xff]
    %v292 = vld [vmem:[%s5 + $0x10] sm:$0xff]
    %v293 = vld [vmem:[%s5 + $0x18] sm:$0xff]
    %295 = vset.pattern.permute.xlu0 0
    %296 = vperm.xlu0 %295, %v290
    %v297 = vpop.permute.xlu0 %296
    %300 = vset.pattern.permute.xlu0 0
    %301 = vperm.xlu0 %300, %v291
    %v302 = vpop.permute.xlu0 %301
    %305 = vset.pattern.permute.xlu0 0
    %306 = vperm.xlu0 %305, %v292
    %v307 = vpop.permute.xlu0 %306
    %310 = vset.pattern.permute.xlu0 0
    %311 = vperm.xlu0 %310, %v293
    %v312 = vpop.permute.xlu0 %311
    %v314 = vmul.f32 %v286, %v297
    %v315 = vmul.f32 %v287, %v302
    %v316 = vmul.f32 %v288, %v307
    %v317 = vmul.f32 %v289, %v312
    %v318 = vsel %vm58, %v314, 0.0
    %v319 = vsel %vm58, %v315, 0.0
    %v320 = vadd.f32 %v318, %v319
    %v321 = vsel %vm58, %v316, 0.0
    %v322 = vadd.f32 %v320, %v321
    %v323 = vsel %vm58, %v317, 0.0
    %v324 = vadd.f32 %v322, %v323
    %v325 = vrot.slane %v324, 4
    %v326 = vadd.f32 %v324, %v325
    %v327 = vrot.slane %v326, 2
    %v328 = vadd.f32 %v326, %v327
    %v329 = vrot.slane %v328, 1
    %v330 = vadd.f32 %v328, %v329
    %v331 = vld [vmem:[#allocation2] sm:$0x1]
    %333 = vset.pattern.permute.xlu0 0
    %334 = vperm.xlu0 %333, %v331
    %v335 = vpop.permute.xlu0 %334
    %v337 = vlaneseq
    %v338 = vshrl.u32 %v337, 7
    %v339 = vsub.s32 0, %v338
    %v340 = vrot.slane %v335, %v339
    %v341 = vadd.f32 %v330, %v340
    %v342 = vsub.f32 0.0, %v341
    %v343 = vmul.f32 %v342, 1.442695
    %v344 = vpow.pop %v343
    %v345 = vadd.f32 %v344, 1.0
    %v346 = vrcp.pop %v345
    %vm347 = vcmask 57344
    %348 = vst.msk [vmem:[#allocation3] sm:$0x1] %vm347, %v346
    // Predicated region
    $region30: #{discriminator_forward.1} parent=1 // pred_check
      _
    $region31: #{discriminator_forward.1} parent=1 // pred_check_branch
      %350 = sbr.rel (0) target = $region33
    $region32: #{discriminator_forward.1} parent=1 // pred_region
      %s352 = ssub.s32 16, 16
      %353 = vsyncadd [#allocation4], %s352
      %s355 = sshll.u32 [#allocation3], 4
      %s356 = int_to_ptr.vmem [resolvable:$true] %s355
      %358 = dma.vmem_to_hbm [thread:$0]  %s356, 16, %s7, [#allocation4]
    $region33: #{discriminator_forward.1} parent=1 // pred_fallthru
      _
    // Predicated region
    $region34: #{discriminator_forward.1} parent=1 // pred_check
      _
    $region35: #{discriminator_forward.1} parent=1 // pred_check_branch
      %360 = sbr.rel (0) target = $region37
    $region36: #{discriminator_forward.1} parent=1 // pred_region
      %361 = dma.done [#allocation4], 16
    $region37: #{discriminator_forward.1} parent=1 // pred_fallthru
      _
    %362 = vsyncpa [#allocation4], 1

</llo_original>
